<compile_context>
chip_gen: v5e
topology: v5e:2x2
jax: 0.10.0
libtpu: 0.0.40
codegen_flags: <defaults>
</compile_context>

<pallas_src>
import functools
import math

import jax
import jax.numpy as jnp
from jax.experimental import pallas as pl
from jax.experimental.pallas import tpu as pltpu


def _torus_sdf_kernel(p_ref, o_ref, *, c, a2):
    # p_ref: (3, R_TILE, C_LANES) block holding the x/y/z planes.
    # o_ref: (R_TILE, C_LANES) distances.
    # No compute micro-opts: VPU/EUP work here is 3-5x smaller than the
    # block's DMA time on all generations, so it is fully hidden behind HBM.
    x = p_ref[0]
    y = p_ref[1]
    z = p_ref[2]
    qx = jnp.sqrt(x * x + y * y) - c
    o_ref[...] = jnp.sqrt(qx * qx + z * z) - a2


@functools.partial(jax.jit, static_argnames=("c", "a2", "r_tile", "c_lanes"))
def _sdf_torus_pallas(p, *, c, a2, r_tile, c_lanes):
    """p: (..., 3) points -> (...,) float32 distances (single fused XLA program)."""
    lead_shape = p.shape[:-1]
    n = math.prod(lead_shape) if lead_shape else 1
    flat = p.reshape(n, 3).astype(jnp.float32)

    # Pad only to a lane granule (c_lanes points); ragged row blocks are
    # handled by Pallas itself via the cdiv grid below.
    n_pad = pl.cdiv(n, c_lanes) * c_lanes
    xyz = flat.T                                       # (3, n) planar
    if n_pad != n:
        xyz = jnp.pad(xyz, ((0, 0), (0, n_pad - n)))   # <512 padded points max
    rows = n_pad // c_lanes
    xyz = xyz.reshape(3, rows, c_lanes)                # lane/sublane dense

    # Row tile: 512 by default (3 MiB in + 1 MiB out per step, ~8 MiB
    # double-buffered -> fits v5e 16 MiB / v7x 32 MiB default scoped VMEM).
    # Halve while the grid would have <2 steps so both v7x TensorCores work.
    if rows < 8:
        r_tile_eff = rows                              # block dim == full dim
    else:
        r_tile_eff = r_tile
        while r_tile_eff > 8 and pl.cdiv(rows, r_tile_eff) < 2:
            r_tile_eff //= 2

    grid = (pl.cdiv(rows, r_tile_eff),)
    kernel = functools.partial(_torus_sdf_kernel, c=c, a2=a2)

    dist_slab = pl.pallas_call(
        kernel,
        out_shape=jax.ShapeDtypeStruct((rows, c_lanes), jnp.float32),
        grid_spec=pl.GridSpec(
            grid=grid,
            # One fused input per step: (3, R_TILE, C_LANES).
            in_specs=[pl.BlockSpec((3, r_tile_eff, c_lanes), lambda i: (0, i, 0))],
            out_specs=pl.BlockSpec((r_tile_eff, c_lanes), lambda i: (i, 0)),
        ),
        compiler_params=pltpu.CompilerParams(
            # Shards the grid across TensorCores on v7x; neutral on v5e/v6e.
            dimension_semantics=("parallel",),
            # Let the transpose/pad producer fuse into the pallas input DMA,
            # removing the extra HBM layout pass where the compiler supports it.
            allow_input_fusion=[True],
        ),
    )(xyz)

    dist = dist_slab.reshape(-1)       # contiguous reshape: free
    if n_pad != n:
        dist = dist[:n]                # only when N % c_lanes != 0
    return dist.reshape(lead_shape)


def sdf_torus_forward(
    p: jax.Array,
    c: float = 0.6,
    a: float = 0.5,
    *,
    r_tile: int = 512,
    c_lanes: int = 512,
    use_pallas: bool | None = None,
) -> dict:
    """Pallas TPU implementation of sdf_torus.forward.

    p: (..., 3) points. Returns {'model_in': p, 'model_out': dist} with
    dist.shape == p.shape[:-1].  Matches the PyTorch module exactly, including
    the (intentional, per the spec) `- a**2` squared-minor-radius offset.
    """
    assert p.shape[-1] == 3, "last axis of p must be 3 (x, y, z)"
    lead_shape = p.shape[:-1]
    n = math.prod(lead_shape) if lead_shape else 1

    if use_pallas is None:
        # Small point counts: a single fused XLA elementwise op beats the
        # pallas launch + layout overhead.  Re-benchmark per generation.
        use_pallas = n >= 65536

    if not use_pallas:
        x, y, z = p[..., 0], p[..., 1], p[..., 2]
        qx = jnp.sqrt(x * x + y * y) - c
        dist = jnp.sqrt(qx * qx + z * z) - a * a
        return {"model_in": p, "model_out": dist.astype(jnp.float32)}

    dist = _sdf_torus_pallas(
        p, c=float(c), a2=float(a) * float(a), r_tile=r_tile, c_lanes=c_lanes
    )
    # TODO(synk): PyTorch sets p.requires_grad=True for autograd; JAX handles
    # differentiation functionally, so there is no stateful equivalent here.
    return {"model_in": p, "model_out": dist}


def _ref_sdf(p, c=0.6, a=0.5):
    x, y, z = p[..., 0], p[..., 1], p[..., 2]
    qx = jnp.sqrt(x * x + y * y) - c
    return jnp.sqrt(qx * qx + z * z) - a * a


if __name__ == "__main__":
    key = jax.random.PRNGKey(0)

    # Small shape consistent with the module: a batch of 3-D query points.
    p = jax.random.uniform(key, (2, 256, 3), dtype=jnp.float32, minval=-1.0, maxval=1.0)
    out = sdf_torus_forward(p, use_pallas=True)  # force the Pallas path even at small N
    jax.block_until_ready(out["model_out"])
    assert out["model_out"].shape == p.shape[:-1]
    assert jnp.allclose(out["model_out"], _ref_sdf(p), atol=1e-5), "mismatch vs reference (small)"

    # Larger input exercising the auto-selected Pallas path (ragged last block,
    # multiple grid steps, no output unpad slice since N % 512 == 0).
    p2 = jax.random.uniform(
        jax.random.PRNGKey(0), (4, 80000, 3), dtype=jnp.float32, minval=-1.0, maxval=1.0
    )
    out2 = sdf_torus_forward(p2)
    jax.block_until_ready(out2["model_out"])
    assert out2["model_out"].shape == p2.shape[:-1]
    assert jnp.allclose(out2["model_out"], _ref_sdf(p2), atol=1e-5), "mismatch vs reference (large)"

    print("KERNEL_OK")
</pallas_src>

<mosaic_0001>
module attributes {stable_mosaic.version = 11 : i64} {
  func.func @_torus_sdf_kernel(%arg0: i32, %arg1: memref<3x1x512xf32, #tpu.memory_space<vmem>>, %arg2: memref<1x512xf32, #tpu.memory_space<vmem>>) attributes {dimension_semantics = [#tpu.dimension_semantics<parallel>], iteration_bounds = array<i64: 1>, scalar_prefetch = 0 : i64, scratch_operands = 0 : i64, tpu.core_type = #tpu.core_type<tc>, window_params = [{transform_indices = @transform_0, window_bounds = array<i64: 3, 1, 512>}, {transform_indices = @transform_1, window_bounds = array<i64: 1, 512>}]} {
    %c0 = arith.constant 0 : index
    %c0_0 = arith.constant 0 : index
    %c0_1 = arith.constant 0 : index
    %0 = vector.load %arg1[%c0, %c0_0, %c0_1] : memref<3x1x512xf32, #tpu.memory_space<vmem>>, vector<1x1x512xf32>
    %1 = vector.shape_cast %0 : vector<1x1x512xf32> to vector<1x512xf32>
    %c1 = arith.constant 1 : index
    %c0_2 = arith.constant 0 : index
    %c0_3 = arith.constant 0 : index
    %2 = vector.load %arg1[%c1, %c0_2, %c0_3] : memref<3x1x512xf32, #tpu.memory_space<vmem>>, vector<1x1x512xf32>
    %3 = vector.shape_cast %2 : vector<1x1x512xf32> to vector<1x512xf32>
    %c2 = arith.constant 2 : index
    %c0_4 = arith.constant 0 : index
    %c0_5 = arith.constant 0 : index
    %4 = vector.load %arg1[%c2, %c0_4, %c0_5] : memref<3x1x512xf32, #tpu.memory_space<vmem>>, vector<1x1x512xf32>
    %5 = vector.shape_cast %4 : vector<1x1x512xf32> to vector<1x512xf32>
    %6 = arith.mulf %1, %1 : vector<1x512xf32>
    %7 = arith.mulf %3, %3 : vector<1x512xf32>
    %8 = arith.addf %6, %7 : vector<1x512xf32>
    %9 = math.sqrt %8 : vector<1x512xf32>
    %cst = arith.constant 6.000000e-01 : f32
    %10 = vector.broadcast %cst : f32 to vector<1x512xf32>
    %11 = arith.subf %9, %10 : vector<1x512xf32>
    %12 = arith.mulf %11, %11 : vector<1x512xf32>
    %13 = arith.mulf %5, %5 : vector<1x512xf32>
    %14 = arith.addf %12, %13 : vector<1x512xf32>
    %15 = math.sqrt %14 : vector<1x512xf32>
    %cst_6 = arith.constant 2.500000e-01 : f32
    %16 = vector.broadcast %cst_6 : f32 to vector<1x512xf32>
    %17 = arith.subf %15, %16 : vector<1x512xf32>
    %c0_7 = arith.constant 0 : index
    %c0_8 = arith.constant 0 : index
    %18 = vector.load %arg2[%c0_7, %c0_8] : memref<1x512xf32, #tpu.memory_space<vmem>>, vector<1x512xf32>
    tpu.vector_store %arg2[%c0_7, %c0_8], %17 {strides = array<i32>} : memref<1x512xf32, #tpu.memory_space<vmem>>, vector<1x512xf32>,
    return
  }
  func.func @transform_0(%arg0: i32) -> (i32, i32, i32) {
    %c0_i32 = arith.constant 0 : i32
    %c0_i32_0 = arith.constant 0 : i32
    %c0_i32_1 = arith.constant 0 : i32
    return %c0_i32, %arg0, %c0_i32_0 : i32, i32, i32
  }
  func.func @transform_1(%arg0: i32) -> (i32, i32) {
    %c0_i32 = arith.constant 0 : i32
    %c0_i32_0 = arith.constant 0 : i32
    return %arg0, %c0_i32 : i32, i32
  }
}

</mosaic_0001>

<llo_original>
// kernel: _sdf_torus_pallas.2
$region0: #{_sdf_torus_pallas.2}
  #allocation0 [shape = 'u32[]', space=smem, size = 0x4, offset = 0x4, fixed_abs, tag = 'smem constant byte address 0x4 - core index']
  #allocation1 [shape = 'u32[72,128]{1,0:T(1,128)}', space=vmem, size = 0x9000, scoped, tag = 'internal scratch']
  %s0 = inlined_call_operand.vmem [shape: f32[3,512], index: 0, kind: input, shape index: {}]
  %s1 = inlined_call_operand.vmem [shape: f32[1,512], index: 1, kind: output, shape index: {}]
  %s2 = sld [smem:[#allocation0]]
  $region14: #{_sdf_torus_pallas.2} parent=0
    _
  %s4 = ssub.s32 1, %s2
  %s5 = scalar_select 0, %s4, %s2
  $region1: #{_sdf_torus_pallas.2} parent=0
    #allocation2 [shape = 'u8[6144]{0}', space=vmem, size = 0x1800, dematerialized = true, scoped, tag = 'FusionAdapter Buffer %fusion.1 = f32[3,1,512]{2,1,0:T(1,128)} fusion(%param_0.1), kind=kLoop, calls=%fused_computation.1.clone, metadata={op_name="jit(_sdf_torus_pallas)/reshape" stack_frame_id=10}']
    // Predicated region
    $region2: #{_sdf_torus_pallas.2} parent=1 // pred_check
      _
    $region3: #{_sdf_torus_pallas.2} parent=1 // pred_check_branch
      %7 = sbr.rel (0) target = $region5
    $region4: #{_sdf_torus_pallas.2} parent=1 // pred_region
      _
    $region5: #{_sdf_torus_pallas.2} parent=1 // pred_fallthru
      _
    %v8 = vld [vmem:[%s0] ss:$0 sm:$0xff]
    %s10 = ssub.s32 2, 1
    %11 = vst [vmem:[#allocation2] sm:%s10] %v8
    %s12 = scalar_lea.vmem %s0, 4
    %v13 = vld [vmem:[%s12] ss:$0 sm:$0xff]
    %s14 = scalar_lea.vmem [#allocation2], 1
    %s16 = ssub.s32 2, 1
    %17 = vst [vmem:[%s14] sm:%s16] %v13
    %s18 = scalar_lea.vmem %s0, 8
    %v19 = vld [vmem:[%s18] ss:$0 sm:$0xff]
    %s20 = scalar_lea.vmem [#allocation2], 2
    %s22 = ssub.s32 2, 1
    %23 = vst [vmem:[%s20] sm:%s22] %v19
    %s24 = scalar_lea.vmem %s0, 12
    %v25 = vld [vmem:[%s24] ss:$0 sm:$0xff]
    %s26 = scalar_lea.vmem [#allocation2], 3
    %s28 = ssub.s32 2, 1
    %29 = vst [vmem:[%s26] sm:%s28] %v25
    %s30 = scalar_lea.vmem %s0, 1
    %v31 = vld [vmem:[%s30] ss:$0 sm:$0xff]
    %s32 = scalar_lea.vmem [#allocation2], 4
    %s34 = ssub.s32 2, 1
    %35 = vst [vmem:[%s32] sm:%s34] %v31
    %s36 = scalar_lea.vmem %s0, 4
    %s37 = scalar_lea.vmem %s36, 1
    %v38 = vld [vmem:[%s37] ss:$0 sm:$0xff]
    %s39 = scalar_lea.vmem [#allocation2], 5
    %s41 = ssub.s32 2, 1
    %42 = vst [vmem:[%s39] sm:%s41] %v38
    %s43 = scalar_lea.vmem %s0, 8
    %s44 = scalar_lea.vmem %s43, 1
    %v45 = vld [vmem:[%s44] ss:$0 sm:$0xff]
    %s46 = scalar_lea.vmem [#allocation2], 6
    %s48 = ssub.s32 2, 1
    %49 = vst [vmem:[%s46] sm:%s48] %v45
    %s50 = scalar_lea.vmem %s0, 12
    %s51 = scalar_lea.vmem %s50, 1
    %v52 = vld [vmem:[%s51] ss:$0 sm:$0xff]
    %s53 = scalar_lea.vmem [#allocation2], 7
    %s55 = ssub.s32 2, 1
    %56 = vst [vmem:[%s53] sm:%s55] %v52
    %s57 = scalar_lea.vmem %s0, 2
    %v58 = vld [vmem:[%s57] ss:$0 sm:$0xff]
    %s59 = scalar_lea.vmem [#allocation2], 8
    %s61 = ssub.s32 2, 1
    %62 = vst [vmem:[%s59] sm:%s61] %v58
    %s63 = scalar_lea.vmem %s0, 4
    %s64 = scalar_lea.vmem %s63, 2
    %v65 = vld [vmem:[%s64] ss:$0 sm:$0xff]
    %s66 = scalar_lea.vmem [#allocation2], 9
    %s68 = ssub.s32 2, 1
    %69 = vst [vmem:[%s66] sm:%s68] %v65
    %s70 = scalar_lea.vmem %s0, 8
    %s71 = scalar_lea.vmem %s70, 2
    %v72 = vld [vmem:[%s71] ss:$0 sm:$0xff]
    %s73 = scalar_lea.vmem [#allocation2], 10
    %s75 = ssub.s32 2, 1
    %76 = vst [vmem:[%s73] sm:%s75] %v72
    %s77 = scalar_lea.vmem %s0, 12
    %s78 = scalar_lea.vmem %s77, 2
    %v79 = vld [vmem:[%s78] ss:$0 sm:$0xff]
    %s80 = scalar_lea.vmem [#allocation2], 11
    %s82 = ssub.s32 2, 1
    %83 = vst [vmem:[%s80] sm:%s82] %v79
    %v84 = vld [vmem:[#allocation2] sm:$0xf]
    %s85 = scalar_lea.vmem [#allocation2], 4
    %v86 = vld [vmem:[%s85] sm:$0xf]
    %s87 = scalar_lea.vmem [#allocation2], 8
    %v88 = vld [vmem:[%s87] sm:$0xf]
    %v89 = vmul.f32 %v84, %v84
    %v90 = vmul.f32 %v86, %v86
    %v91 = vadd.f32 %v89, %v90
    %v92 = vrsqrt.pop %v91
    %v93 = vmul.f32 %v92, %v91
    %v94 = vmul.f32 %v93, %v92
    %v95 = vmul.f32 0.5, %v94
    %v96 = vsub.f32 1.5, %v95
    %v97 = vmul.f32 %v92, %v96
    %v98 = vmul.f32 %v91, %v97
    %vm99 = vcmp.eq.f32.partialorder %v91, inf
    %v100 = vsel %vm99, %v91, %v98
    %vm101 = vcmp.eq.f32.partialorder %v91, 0.0
    %v102 = vand.u32 %v91, 2147483648
    %v103 = vsel %vm101, %v102, %v100
    %v104 = vsub.f32 %v103, 0.6
    %v105 = vmul.f32 %v104, %v104
    %v106 = vmul.f32 %v88, %v88
    %v107 = vadd.f32 %v105, %v106
    %v108 = vrsqrt.pop %v107
    %v109 = vmul.f32 %v108, %v107
    %v110 = vmul.f32 %v109, %v108
    %v111 = vmul.f32 0.5, %v110
    %v112 = vsub.f32 1.5, %v111
    %v113 = vmul.f32 %v108, %v112
    %v114 = vmul.f32 %v107, %v113
    %vm115 = vcmp.eq.f32.partialorder %v107, inf
    %v116 = vsel %vm115, %v107, %v114
    %vm117 = vcmp.eq.f32.partialorder %v107, 0.0
    %v118 = vand.u32 %v107, 2147483648
    %v119 = vsel %vm117, %v118, %v116
    %v120 = vsub.f32 %v119, 0.25
    %v121 = vlaneseq
    %vm122 = vcmp.ge.s32.totalorder %v121, 0
    %vm123 = vcmp.lt.s32.totalorder %v121, 512
    %vm124 = vmand %vm122, %vm123
    %125 = vst.msk [vmem:[%s1] sm:$0xf] %vm124, %v120
    // Predicated region
    $region6: #{_sdf_torus_pallas.2} parent=1 // pred_check
      _
    $region7: #{_sdf_torus_pallas.2} parent=1 // pred_check_branch
      %127 = sbr.rel (0) target = $region9
    $region8: #{_sdf_torus_pallas.2} parent=1 // pred_region
      _
    $region9: #{_sdf_torus_pallas.2} parent=1 // pred_fallthru
      _
    // Predicated region
    $region10: #{_sdf_torus_pallas.2} parent=1 // pred_check
      _
    $region11: #{_sdf_torus_pallas.2} parent=1 // pred_check_branch
      %129 = sbr.rel (0) target = $region13
    $region12: #{_sdf_torus_pallas.2} parent=1 // pred_region
      _
    $region13: #{_sdf_torus_pallas.2} parent=1 // pred_fallthru
      _

</llo_original>
